<compile_context>
chip_gen: v6e
topology: v6e:2x2x1
jax: 0.10.0
libtpu: 0.0.40
codegen_flags: <defaults>
</compile_context>

<pallas_src>
import numpy as np
import jax
import jax.numpy as jnp
from jax.experimental import pallas as pl
from jax.experimental.pallas import tpu as pltpu

# ----------------------- config (consistent with the module) ----------------
B = 2                       # batch
DIM = 8                     # `dim`
H, W = 8, 8                 # input_resolution
L = H * W + 1               # tokens incl. the class token dropped by forward()
CLS_NUM = 4                 # cls_num

C1_OUT = 2 * DIM            # conv1: Conv2d(dim, 2*dim, 3, stride=2, padding=1)
C2_OUT = 4 * DIM            # conv2: Conv2d(2*dim, 4*dim, 5, stride=4, padding=2)
OH1 = (H + 2 * 1 - 3) // 2 + 1
OW1 = (W + 2 * 1 - 3) // 2 + 1
OH2 = (OH1 + 2 * 2 - 5) // 4 + 1
OW2 = (OW1 + 2 * 2 - 5) // 4 + 1
P1 = OH1 * OW1              # conv1 output positions (4*4 = 16)
XFLAT = H * W * DIM         # flattened token-grid length (512)
OUT_LANES = 128             # lane-dense softmax slab (unmasked stores)

# TODO(synk): the conv2-as-dense construction assumes a 1x1 conv2 output map
# (true for these shapes); a general OH2/OW2 would need an in-kernel mean.
assert OH2 == 1 and OW2 == 1
assert CLS_NUM <= OUT_LANES


# ----------------------------- Pallas kernel --------------------------------
def locnet_kernel(x_ref, w1_ref, b1_ref, w2_ref, b2_ref, fcw_ref, fcb_ref,
                  out_ref):
    # conv1 (stride 2, pad 1) folded into one dense matmul; batch is M.
    h1 = jnp.dot(x_ref[...], w1_ref[...],
                 preferred_element_type=jnp.float32) + b1_ref[...]
    h1 = jnp.maximum(h1, 0.0)                              # (B, P1*2dim) ReLU

    # conv2 (1x1 spatial output) == dense layer over the flattened conv1 map;
    # AdaptiveAvgPool2d((1,1)) of a 1x1 map is the identity.
    h2 = jnp.dot(h1, w2_ref[...],
                 preferred_element_type=jnp.float32) + b2_ref[...]
    h2 = jnp.maximum(h2, 0.0)                              # (B, 4dim) ReLU

    # fc (lane-padded to 128) + exact softmax; padded lanes carry a -1e30 bias
    # so exp() underflows to zero and they never perturb the normalization.
    logits = jnp.dot(h2, fcw_ref[...],
                     preferred_element_type=jnp.float32) + fcb_ref[...]
    m = jnp.max(logits, axis=-1, keepdims=True)
    e = jnp.exp(logits - m)
    out_ref[...] = e / jnp.sum(e, axis=-1, keepdims=True)


# ------------------ one-time host-side weight re-layout ---------------------
def prepare_params(params):
    """Runs once when params are loaded; never inside the per-call jit."""
    conv1_w, conv1_b, conv2_w, conv2_b, fc_w, fc_b = (
        np.asarray(p, np.float32) for p in params)

    # conv1 as a dense matmul over the flattened NHWC token grid: the stride-2
    # / pad-1 sampling and the zero padding are folded into the weight.
    w1d = np.zeros((XFLAT, P1 * C1_OUT), np.float32)
    for oh in range(OH1):
        for ow in range(OW1):
            out0 = (oh * OW1 + ow) * C1_OUT
            for kh in range(3):
                for kw in range(3):
                    h = 2 * oh + kh - 1
                    w = 2 * ow + kw - 1
                    if 0 <= h < H and 0 <= w < W:
                        in0 = (h * W + w) * DIM
                        w1d[in0:in0 + DIM, out0:out0 + C1_OUT] = \
                            conv1_w[:, :, kh, kw].T        # (Cin, Cout)
    b1t = np.tile(conv1_b, P1).reshape(1, P1 * C1_OUT)

    # conv2 effective dense weight over the flattened conv1 map (positions only
    # reached through zero padding keep zero rows).
    w2m = np.zeros((P1 * C1_OUT, C2_OUT), np.float32)
    for kh in range(5):
        for kw in range(5):
            r, c = kh - 2, kw - 2                          # stride 4, pad 2, oh=ow=0
            if 0 <= r < OH1 and 0 <= c < OW1:
                s = (r * OW1 + c) * C1_OUT
                w2m[s:s + C1_OUT, :] = conv2_w[:, :, kh, kw].T
    b2r = conv2_b.reshape(1, C2_OUT)

    # fc padded to a lane-dense 128-wide slab; pad lanes get a -1e30 bias.
    fcwp = np.zeros((C2_OUT, OUT_LANES), np.float32)
    fcwp[:, :CLS_NUM] = fc_w.T
    fcbp = np.full((1, OUT_LANES), -1e30, np.float32)
    fcbp[0, :CLS_NUM] = fc_b

    return tuple(jnp.asarray(a) for a in (w1d, b1t, w2m, b2r, fcwp, fcbp))


_VMEM = pl.BlockSpec(memory_space=pltpu.MemorySpace.VMEM)


@jax.jit
def localization_net(x_tokens, prepared):
    w1d, b1t, w2m, b2r, fcwp, fcbp = prepared
    # Drop the class token; tokens are already in (h, w) raster order with
    # channels minor, so this flatten IS the NHWC image (layout-only).
    xflat = x_tokens[:, 1:, :].reshape(B, XFLAT)
    out = pl.pallas_call(
        locnet_kernel,
        out_shape=jax.ShapeDtypeStruct((B, OUT_LANES), jnp.float32),
        in_specs=[_VMEM] * 7,
        out_specs=_VMEM,
    )(xflat, w1d, b1t, w2m, b2r, fcwp, fcbp)
    return out[:, :CLS_NUM]


# ------------------------------ pure-JAX reference ---------------------------
def localization_net_reference(x_tokens, params):
    """Pure-JAX mirror of the PyTorch forward (for self-check)."""
    conv1_w, conv1_b, conv2_w, conv2_b, fc_w, fc_b = params
    x = jnp.transpose(x_tokens[:, 1:, :], (0, 2, 1)).reshape(B, DIM, H, W)
    y = jax.lax.conv_general_dilated(
        x, conv1_w, (2, 2), ((1, 1), (1, 1)),
        dimension_numbers=("NCHW", "OIHW", "NCHW"))
    y = jnp.maximum(y + conv1_b[None, :, None, None], 0.0)
    z = jax.lax.conv_general_dilated(
        y, conv2_w, (4, 4), ((2, 2), (2, 2)),
        dimension_numbers=("NCHW", "OIHW", "NCHW"))
    z = jnp.maximum(z + conv2_b[None, :, None, None], 0.0)
    pooled = jnp.mean(z, axis=(2, 3))                      # adaptive avg pool (1,1)
    logits = pooled @ fc_w.T + fc_b
    return jax.nn.softmax(logits, axis=1)


if __name__ == "__main__":
    key = jax.random.PRNGKey(0)
    ks = jax.random.split(key, 7)

    x = jax.random.normal(ks[0], (B, L, DIM), dtype=jnp.float32)
    conv1_w = 0.1 * jax.random.normal(ks[1], (C1_OUT, DIM, 3, 3), jnp.float32)
    conv1_b = 0.05 * jax.random.normal(ks[2], (C1_OUT,), jnp.float32)
    conv2_w = 0.1 * jax.random.normal(ks[3], (C2_OUT, C1_OUT, 5, 5), jnp.float32)
    conv2_b = 0.05 * jax.random.normal(ks[4], (C2_OUT,), jnp.float32)
    fc_w = 0.1 * jax.random.normal(ks[5], (CLS_NUM, C2_OUT), jnp.float32)
    fc_b = 0.05 * jax.random.normal(ks[6], (CLS_NUM,), jnp.float32)
    params = (conv1_w, conv1_b, conv2_w, conv2_b, fc_w, fc_b)

    prepared = prepare_params(params)          # one-time weight re-layout

    out = jax.block_until_ready(localization_net(x, prepared))
    ref = jax.block_until_ready(localization_net_reference(x, params))

    np.testing.assert_allclose(np.asarray(out), np.asarray(ref),
                               rtol=2e-3, atol=2e-3)
    print("KERNEL_OK")
</pallas_src>

<mosaic_0001>
module attributes {stable_mosaic.version = 11 : i64} {
  func.func @locnet_kernel(%arg0: memref<2x512xf32, #tpu.memory_space<vmem>>, %arg1: memref<512x256xf32, #tpu.memory_space<vmem>>, %arg2: memref<1x256xf32, #tpu.memory_space<vmem>>, %arg3: memref<256x32xf32, #tpu.memory_space<vmem>>, %arg4: memref<1x32xf32, #tpu.memory_space<vmem>>, %arg5: memref<32x128xf32, #tpu.memory_space<vmem>>, %arg6: memref<1x128xf32, #tpu.memory_space<vmem>>, %arg7: memref<2x128xf32, #tpu.memory_space<vmem>>) attributes {dimension_semantics = [], scalar_prefetch = 0 : i64, scratch_operands = 0 : i64, tpu.core_type = #tpu.core_type<tc>} {
    %c0 = arith.constant 0 : index
    %c0_0 = arith.constant 0 : index
    %0 = vector.load %arg0[%c0, %c0_0] : memref<2x512xf32, #tpu.memory_space<vmem>>, vector<2x512xf32>
    %c0_1 = arith.constant 0 : index
    %c0_2 = arith.constant 0 : index
    %1 = vector.load %arg1[%c0_1, %c0_2] : memref<512x256xf32, #tpu.memory_space<vmem>>, vector<512x256xf32>
    %cst = arith.constant dense<0.000000e+00> : vector<2x256xf32>
    %2 = tpu.matmul %0, %1, %cst {dimension_numbers = #tpu.dot_dimension_numbers<[1], [0], [0], [1], [0, 0, 1, 1], [], []>} : vector<2x512xf32>, vector<512x256xf32>, vector<2x256xf32> -> vector<2x256xf32>
    %c0_3 = arith.constant 0 : index
    %c0_4 = arith.constant 0 : index
    %3 = vector.load %arg2[%c0_3, %c0_4] : memref<1x256xf32, #tpu.memory_space<vmem>>, vector<1x256xf32>
    %4 = vector.broadcast %3 : vector<1x256xf32> to vector<2x256xf32>
    %5 = arith.addf %2, %4 : vector<2x256xf32>
    %cst_5 = arith.constant 0.000000e+00 : f32
    %6 = vector.broadcast %cst_5 : f32 to vector<2x256xf32>
    %7 = arith.maximumf %5, %6 : vector<2x256xf32>
    %c0_6 = arith.constant 0 : index
    %c0_7 = arith.constant 0 : index
    %8 = vector.load %arg3[%c0_6, %c0_7] : memref<256x32xf32, #tpu.memory_space<vmem>>, vector<256x32xf32>
    %cst_8 = arith.constant dense<0.000000e+00> : vector<2x32xf32>
    %9 = tpu.matmul %7, %8, %cst_8 {dimension_numbers = #tpu.dot_dimension_numbers<[1], [0], [0], [1], [0, 0, 1, 1], [], []>} : vector<2x256xf32>, vector<256x32xf32>, vector<2x32xf32> -> vector<2x32xf32>
    %c0_9 = arith.constant 0 : index
    %c0_10 = arith.constant 0 : index
    %10 = vector.load %arg4[%c0_9, %c0_10] : memref<1x32xf32, #tpu.memory_space<vmem>>, vector<1x32xf32>
    %11 = vector.broadcast %10 : vector<1x32xf32> to vector<2x32xf32>
    %12 = arith.addf %9, %11 : vector<2x32xf32>
    %cst_11 = arith.constant 0.000000e+00 : f32
    %13 = vector.broadcast %cst_11 : f32 to vector<2x32xf32>
    %14 = arith.maximumf %12, %13 : vector<2x32xf32>
    %c0_12 = arith.constant 0 : index
    %c0_13 = arith.constant 0 : index
    %15 = vector.load %arg5[%c0_12, %c0_13] : memref<32x128xf32, #tpu.memory_space<vmem>>, vector<32x128xf32>
    %cst_14 = arith.constant dense<0.000000e+00> : vector<2x128xf32>
    %16 = tpu.matmul %14, %15, %cst_14 {dimension_numbers = #tpu.dot_dimension_numbers<[1], [0], [0], [1], [0, 0, 1, 1], [], []>} : vector<2x32xf32>, vector<32x128xf32>, vector<2x128xf32> -> vector<2x128xf32>
    %c0_15 = arith.constant 0 : index
    %c0_16 = arith.constant 0 : index
    %17 = vector.load %arg6[%c0_15, %c0_16] : memref<1x128xf32, #tpu.memory_space<vmem>>, vector<1x128xf32>
    %18 = vector.broadcast %17 : vector<1x128xf32> to vector<2x128xf32>
    %19 = arith.addf %16, %18 : vector<2x128xf32>
    %cst_17 = arith.constant dense<0xFF800000> : vector<2xf32>
    %20 = vector.multi_reduction <maximumf>, %19, %cst_17 [1] : vector<2x128xf32> to vector<2xf32>
    %21 = vector.shape_cast %20 : vector<2xf32> to vector<2x1xf32>
    %22 = vector.broadcast %21 : vector<2x1xf32> to vector<2x128xf32>
    %23 = arith.subf %19, %22 : vector<2x128xf32>
    %24 = math.exp %23 : vector<2x128xf32>
    %cst_18 = arith.constant dense<0.000000e+00> : vector<2xf32>
    %25 = vector.multi_reduction <add>, %24, %cst_18 [1] : vector<2x128xf32> to vector<2xf32>
    %26 = vector.shape_cast %25 : vector<2xf32> to vector<2x1xf32>
    %27 = vector.broadcast %26 : vector<2x1xf32> to vector<2x128xf32>
    %28 = arith.divf %24, %27 : vector<2x128xf32>
    %c0_19 = arith.constant 0 : index
    %c0_20 = arith.constant 0 : index
    %29 = vector.load %arg7[%c0_19, %c0_20] : memref<2x128xf32, #tpu.memory_space<vmem>>, vector<2x128xf32>
    tpu.vector_store %arg7[%c0_19, %c0_20], %28 {strides = array<i32>} : memref<2x128xf32, #tpu.memory_space<vmem>>, vector<2x128xf32>,
    return
  }
}

</mosaic_0001>

<llo_original>
// kernel: localization_net.1
$region0: #{localization_net.1}
  #allocation0 [shape = 'u32[]', space=smem, size = 0x4, offset = 0x4, fixed_abs, tag = 'smem constant byte address 0x4 - core index']
  #allocation1 [shape = 'u32[144,128]{1,0:T(1,128)}', space=vmem, size = 0x12000, scoped, tag = 'internal scratch']
  %s0 = inlined_call_operand.vmem [shape: f32[2,512], index: 0, kind: input, shape index: {}]
  %s1 = inlined_call_operand.hbm [shape: f32[512,256], index: 1, kind: input, shape index: {}]
  %s2 = inlined_call_operand.vmem [shape: f32[1,256], index: 2, kind: input, shape index: {}]
  %s3 = inlined_call_operand.vmem [shape: f32[256,32], index: 3, kind: input, shape index: {}]
  %s4 = inlined_call_operand.vmem [shape: f32[1,32], index: 4, kind: input, shape index: {}]
  %s5 = inlined_call_operand.vmem [shape: f32[32,128], index: 5, kind: input, shape index: {}]
  %s6 = inlined_call_operand.vmem [shape: f32[1,128], index: 6, kind: input, shape index: {}]
  %s7 = inlined_call_operand.hbm [shape: f32[2,128], index: 7, kind: output, shape index: {}]
  %s8 = sld [smem:[#allocation0]]
  $region42: #{localization_net.1} parent=0
    _
  %s10 = ssub.s32 1, %s8
  %s11 = scalar_select 0, %s10, %s8
  $region1: #{localization_net.1} parent=0
    #allocation2 [shape = 'u8[524288]{0}', space=vmem, size = 0x80000, scoped, tag = 'input window, operand 1, single buffered']
    #allocation3 [shape = 's32[1]{0}', space=sflag, size = 0x4, scoped, tag = 'scoped memory for localization_net.1']
    #allocation4 [shape = 's32[1]{0}', space=sflag, size = 0x4, scoped, tag = 'scoped memory for localization_net.1']
    #allocation5 [shape = 'u8[1024]{0}', space=vmem, size = 0x400, scoped, tag = 'output window, operand 0, single buffered']
    %12 = vsyncpa [#allocation3], 0
    %13 = vsyncpa [#allocation4], 0
    // Predicated region
    $region2: #{localization_net.1} parent=1 // pred_check
      _
    $region3: #{localization_net.1} parent=1 // pred_check_branch
      %15 = sbr.rel (0) target = $region5
    $region4: #{localization_net.1} parent=1 // pred_region
      _
    $region5: #{localization_net.1} parent=1 // pred_fallthru
      _
    // Predicated region
    $region6: #{localization_net.1} parent=1 // pred_check
      _
    $region7: #{localization_net.1} parent=1 // pred_check_branch
      %17 = sbr.rel (0) target = $region9
    $region8: #{localization_net.1} parent=1 // pred_region
      %s19 = ssub.s32 16384, 16384
      %20 = vsyncadd [#allocation3], %s19
      %s21 = sshll.u32 [#allocation2], 4
      %s22 = int_to_ptr.vmem [resolvable:$true] %s21
      %27 = dma.hbm_to_vmem [thread:$0]  %s1, 16384, %s22, [#allocation3], 256, 256, 16
    $region9: #{localization_net.1} parent=1 // pred_fallthru
      _
    // Predicated region
    $region10: #{localization_net.1} parent=1 // pred_check
      _
    $region11: #{localization_net.1} parent=1 // pred_check_branch
      %29 = sbr.rel (0) target = $region13
    $region12: #{localization_net.1} parent=1 // pred_region
      _
    $region13: #{localization_net.1} parent=1 // pred_fallthru
      _
    // Predicated region
    $region14: #{localization_net.1} parent=1 // pred_check
      _
    $region15: #{localization_net.1} parent=1 // pred_check_branch
      %31 = sbr.rel (0) target = $region17
    $region16: #{localization_net.1} parent=1 // pred_region
      _
    $region17: #{localization_net.1} parent=1 // pred_fallthru
      _
    // Predicated region
    $region18: #{localization_net.1} parent=1 // pred_check
      _
    $region19: #{localization_net.1} parent=1 // pred_check_branch
      %33 = sbr.rel (0) target = $region21
    $region20: #{localization_net.1} parent=1 // pred_region
      _
    $region21: #{localization_net.1} parent=1 // pred_fallthru
      _
    // Predicated region
    $region22: #{localization_net.1} parent=1 // pred_check
      _
    $region23: #{localization_net.1} parent=1 // pred_check_branch
      %35 = sbr.rel (0) target = $region25
    $region24: #{localization_net.1} parent=1 // pred_region
      _
    $region25: #{localization_net.1} parent=1 // pred_fallthru
      _
    // Predicated region
    $region26: #{localization_net.1} parent=1 // pred_check
      _
    $region27: #{localization_net.1} parent=1 // pred_check_branch
      %37 = sbr.rel (0) target = $region29
    $region28: #{localization_net.1} parent=1 // pred_region
      _
    $region29: #{localization_net.1} parent=1 // pred_fallthru
      _
    // Predicated region
    $region30: #{localization_net.1} parent=1 // pred_check
      _
    $region31: #{localization_net.1} parent=1 // pred_check_branch
      %39 = sbr.rel (0) target = $region33
    $region32: #{localization_net.1} parent=1 // pred_region
      %40 = dma.done [#allocation3], 16384
    $region33: #{localization_net.1} parent=1 // pred_fallthru
      _
    %v41 = vld [vmem:[%s0] sm:$0xff]
    %v42 = vld [vmem:[#allocation2] sm:$0xff]
    %v43 = vld [vmem:[#allocation2 + $0x8] sm:$0xff]
    %v44 = vld [vmem:[#allocation2 + $0x10] sm:$0xff]
    %v45 = vld [vmem:[#allocation2 + $0x18] sm:$0xff]
    %v46 = vld [vmem:[#allocation2 + $0x20] sm:$0xff]
    %v47 = vld [vmem:[#allocation2 + $0x28] sm:$0xff]
    %v48 = vld [vmem:[#allocation2 + $0x30] sm:$0xff]
    %v49 = vld [vmem:[#allocation2 + $0x38] sm:$0xff]
    %v50 = vld [vmem:[#allocation2 + $0x40] sm:$0xff]
    %v51 = vld [vmem:[#allocation2 + $0x48] sm:$0xff]
    %v52 = vld [vmem:[#allocation2 + $0x50] sm:$0xff]
    %v53 = vld [vmem:[#allocation2 + $0x58] sm:$0xff]
    %v54 = vld [vmem:[#allocation2 + $0x60] sm:$0xff]
    %v55 = vld [vmem:[#allocation2 + $0x68] sm:$0xff]
    %v56 = vld [vmem:[#allocation2 + $0x70] sm:$0xff]
    %v57 = vld [vmem:[#allocation2 + $0x78] sm:$0xff]
    %v58 = vld [vmem:[#allocation2 + $0x80] sm:$0xff]
    %v59 = vld [vmem:[#allocation2 + $0x88] sm:$0xff]
    %v60 = vld [vmem:[#allocation2 + $0x90] sm:$0xff]
    %v61 = vld [vmem:[#allocation2 + $0x98] sm:$0xff]
    %v62 = vld [vmem:[#allocation2 + $0xa0] sm:$0xff]
    %v63 = vld [vmem:[#allocation2 + $0xa8] sm:$0xff]
    %v64 = vld [vmem:[#allocation2 + $0xb0] sm:$0xff]
    %v65 = vld [vmem:[#allocation2 + $0xb8] sm:$0xff]
    %v66 = vld [vmem:[#allocation2 + $0xc0] sm:$0xff]
    %v67 = vld [vmem:[#allocation2 + $0xc8] sm:$0xff]
    %v68 = vld [vmem:[#allocation2 + $0xd0] sm:$0xff]
    %v69 = vld [vmem:[#allocation2 + $0xd8] sm:$0xff]
    %v70 = vld [vmem:[#allocation2 + $0xe0] sm:$0xff]
    %v71 = vld [vmem:[#allocation2 + $0xe8] sm:$0xff]
    %v72 = vld [vmem:[#allocation2 + $0xf0] sm:$0xff]
    %v73 = vld [vmem:[#allocation2 + $0xf8] sm:$0xff]
    %v74 = vld [vmem:[#allocation2 + $0x100] sm:$0xff]
    %v75 = vld [vmem:[#allocation2 + $0x108] sm:$0xff]
    %v76 = vld [vmem:[#allocation2 + $0x110] sm:$0xff]
    %v77 = vld [vmem:[#allocation2 + $0x118] sm:$0xff]
    %v78 = vld [vmem:[#allocation2 + $0x120] sm:$0xff]
    %v79 = vld [vmem:[#allocation2 + $0x128] sm:$0xff]
    %v80 = vld [vmem:[#allocation2 + $0x130] sm:$0xff]
    %v81 = vld [vmem:[#allocation2 + $0x138] sm:$0xff]
    %v82 = vld [vmem:[#allocation2 + $0x140] sm:$0xff]
    %v83 = vld [vmem:[#allocation2 + $0x148] sm:$0xff]
    %v84 = vld [vmem:[#allocation2 + $0x150] sm:$0xff]
    %v85 = vld [vmem:[#allocation2 + $0x158] sm:$0xff]
    %v86 = vld [vmem:[#allocation2 + $0x160] sm:$0xff]
    %v87 = vld [vmem:[#allocation2 + $0x168] sm:$0xff]
    %v88 = vld [vmem:[#allocation2 + $0x170] sm:$0xff]
    %v89 = vld [vmem:[#allocation2 + $0x178] sm:$0xff]
    %v90 = vld [vmem:[#allocation2 + $0x180] sm:$0xff]
    %v91 = vld [vmem:[#allocation2 + $0x188] sm:$0xff]
    %v92 = vld [vmem:[#allocation2 + $0x190] sm:$0xff]
    %v93 = vld [vmem:[#allocation2 + $0x198] sm:$0xff]
    %v94 = vld [vmem:[#allocation2 + $0x1a0] sm:$0xff]
    %v95 = vld [vmem:[#allocation2 + $0x1a8] sm:$0xff]
    %v96 = vld [vmem:[#allocation2 + $0x1b0] sm:$0xff]
    %v97 = vld [vmem:[#allocation2 + $0x1b8] sm:$0xff]
    %v98 = vld [vmem:[#allocation2 + $0x1c0] sm:$0xff]
    %v99 = vld [vmem:[#allocation2 + $0x1c8] sm:$0xff]
    %v100 = vld [vmem:[#allocation2 + $0x1d0] sm:$0xff]
    %v101 = vld [vmem:[#allocation2 + $0x1d8] sm:$0xff]
    %v102 = vld [vmem:[#allocation2 + $0x1e0] sm:$0xff]
    %v103 = vld [vmem:[#allocation2 + $0x1e8] sm:$0xff]
    %v104 = vld [vmem:[#allocation2 + $0x1f0] sm:$0xff]
    %v105 = vld [vmem:[#allocation2 + $0x1f8] sm:$0xff]
    %v106 = vld [vmem:[#allocation2 + $0x200] sm:$0xff]
    %v107 = vld [vmem:[#allocation2 + $0x208] sm:$0xff]
    %v108 = vld [vmem:[#allocation2 + $0x210] sm:$0xff]
    %v109 = vld [vmem:[#allocation2 + $0x218] sm:$0xff]
    %v110 = vld [vmem:[#allocation2 + $0x220] sm:$0xff]
    %v111 = vld [vmem:[#allocation2 + $0x228] sm:$0xff]
    %v112 = vld [vmem:[#allocation2 + $0x230] sm:$0xff]
    %v113 = vld [vmem:[#allocation2 + $0x238] sm:$0xff]
    %v114 = vld [vmem:[#allocation2 + $0x240] sm:$0xff]
    %v115 = vld [vmem:[#allocation2 + $0x248] sm:$0xff]
    %v116 = vld [vmem:[#allocation2 + $0x250] sm:$0xff]
    %v117 = vld [vmem:[#allocation2 + $0x258] sm:$0xff]
    %v118 = vld [vmem:[#allocation2 + $0x260] sm:$0xff]
    %v119 = vld [vmem:[#allocation2 + $0x268] sm:$0xff]
    %v120 = vld [vmem:[#allocation2 + $0x270] sm:$0xff]
    %v121 = vld [vmem:[#allocation2 + $0x278] sm:$0xff]
    %v122 = vld [vmem:[#allocation2 + $0x280] sm:$0xff]
    %v123 = vld [vmem:[#allocation2 + $0x288] sm:$0xff]
    %v124 = vld [vmem:[#allocation2 + $0x290] sm:$0xff]
    %v125 = vld [vmem:[#allocation2 + $0x298] sm:$0xff]
    %v126 = vld [vmem:[#allocation2 + $0x2a0] sm:$0xff]
    %v127 = vld [vmem:[#allocation2 + $0x2a8] sm:$0xff]
    %v128 = vld [vmem:[#allocation2 + $0x2b0] sm:$0xff]
    %v129 = vld [vmem:[#allocation2 + $0x2b8] sm:$0xff]
    %v130 = vld [vmem:[#allocation2 + $0x2c0] sm:$0xff]
    %v131 = vld [vmem:[#allocation2 + $0x2c8] sm:$0xff]
    %v132 = vld [vmem:[#allocation2 + $0x2d0] sm:$0xff]
    %v133 = vld [vmem:[#allocation2 + $0x2d8] sm:$0xff]
    %v134 = vld [vmem:[#allocation2 + $0x2e0] sm:$0xff]
    %v135 = vld [vmem:[#allocation2 + $0x2e8] sm:$0xff]
    %v136 = vld [vmem:[#allocation2 + $0x2f0] sm:$0xff]
    %v137 = vld [vmem:[#allocation2 + $0x2f8] sm:$0xff]
    %v138 = vld [vmem:[#allocation2 + $0x300] sm:$0xff]
    %v139 = vld [vmem:[#allocation2 + $0x308] sm:$0xff]
    %v140 = vld [vmem:[#allocation2 + $0x310] sm:$0xff]
    %v141 = vld [vmem:[#allocation2 + $0x318] sm:$0xff]
    %v142 = vld [vmem:[#allocation2 + $0x320] sm:$0xff]
    %v143 = vld [vmem:[#allocation2 + $0x328] sm:$0xff]
    %v144 = vld [vmem:[#allocation2 + $0x330] sm:$0xff]
    %v145 = vld [vmem:[#allocation2 + $0x338] sm:$0xff]
    %v146 = vld [vmem:[#allocation2 + $0x340] sm:$0xff]
    %v147 = vld [vmem:[#allocation2 + $0x348] sm:$0xff]
    %v148 = vld [vmem:[#allocation2 + $0x350] sm:$0xff]
    %v149 = vld [vmem:[#allocation2 + $0x358] sm:$0xff]
    %v150 = vld [vmem:[#allocation2 + $0x360] sm:$0xff]
    %v151 = vld [vmem:[#allocation2 + $0x368] sm:$0xff]
    %v152 = vld [vmem:[#allocation2 + $0x370] sm:$0xff]
    %v153 = vld [vmem:[#allocation2 + $0x378] sm:$0xff]
    %v154 = vld [vmem:[#allocation2 + $0x380] sm:$0xff]
    %v155 = vld [vmem:[#allocation2 + $0x388] sm:$0xff]
    %v156 = vld [vmem:[#allocation2 + $0x390] sm:$0xff]
    %v157 = vld [vmem:[#allocation2 + $0x398] sm:$0xff]
    %v158 = vld [vmem:[#allocation2 + $0x3a0] sm:$0xff]
    %v159 = vld [vmem:[#allocation2 + $0x3a8] sm:$0xff]
    %v160 = vld [vmem:[#allocation2 + $0x3b0] sm:$0xff]
    %v161 = vld [vmem:[#allocation2 + $0x3b8] sm:$0xff]
    %v162 = vld [vmem:[#allocation2 + $0x3c0] sm:$0xff]
    %v163 = vld [vmem:[#allocation2 + $0x3c8] sm:$0xff]
    %v164 = vld [vmem:[#allocation2 + $0x3d0] sm:$0xff]
    %v165 = vld [vmem:[#allocation2 + $0x3d8] sm:$0xff]
    %v166 = vld [vmem:[#allocation2 + $0x3e0] sm:$0xff]
    %v167 = vld [vmem:[#allocation2 + $0x3e8] sm:$0xff]
    %v168 = vld [vmem:[#allocation2 + $0x3f0] sm:$0xff]
    %v169 = vld [vmem:[#allocation2 + $0x3f8] sm:$0xff]
    %v170 = vld [vmem:[%s2] sm:$0x3]
    %v172 = vlaneseq
    %v173 = vshrl.u32 %v172, 7
    %v174 = vsub.s32 0, %v173
    %v175 = vrot.slane %v170, %v174
    %v176 = vlaneseq
    %v177 = vshrl.u32 %v176, 7
    %v178 = vsub.s32 1, %v177
    %v179 = vrot.slane %v170, %v178
    %v183 = vcombine.high %v41, %v41
    %v185 = vunpack.c.l.s4 1983009808
    %v186 = vunpack.c.0.s8 %v185
    %v187 = vlaneseq
    %v188 = vshrl.u32 %v187, 7
    %v189 = vsub.s32 %v186, %v188
    %v190 = vrot.slane %v41, %v189
    %v192 = vunpack.c.l.s4 1983009808
    %v193 = vunpack.c.0.s8 %v192
    %v194 = vlaneseq
    %v195 = vshrl.u32 %v194, 7
    %v196 = vsub.s32 %v193, %v195
    %v197 = vrot.slane %v183, %v196
    %v198 = vcombine.high %v190, %v190
    %v199 = vcombine.high %v197, %v197
    %204 = vmatprep.subr.mxu0 %v73
    %205 = vmatpush1.msra.mxu0 %v72
    %206 = vmatprep.subr.mxu0 %v71
    %207 = vmatpush1.msra.mxu0 %v70
    %208 = vmatprep.subr.mxu0 %v69
    %209 = vmatpush1.msra.mxu0 %v68
    %210 = vmatprep.subr.mxu0 %v67
    %211 = vmatpush1.msra.mxu0 %v66
    %212 = vmatprep.subr.mxu0 %v65
    %213 = vmatpush1.msra.mxu0 %v64
    %214 = vmatprep.subr.mxu0 %v63
    %215 = vmatpush1.msra.mxu0 %v62
    %216 = vmatprep.subr.mxu0 %v61
    %217 = vmatpush1.msra.mxu0 %v60
    %218 = vmatprep.subr.mxu0 %v59
    %219 = vmatpush1.msra.mxu0 %v58
    %220 = vmatprep.subr.mxu0 %v57
    %221 = vmatpush1.msra.mxu0 %v56
    %222 = vmatprep.subr.mxu0 %v55
    %223 = vmatpush1.msra.mxu0 %v54
    %224 = vmatprep.subr.mxu0 %v53
    %225 = vmatpush1.msra.mxu0 %v52
    %226 = vmatprep.subr.mxu0 %v51
    %227 = vmatpush1.msra.mxu0 %v50
    %228 = vmatprep.subr.mxu0 %v49
    %229 = vmatpush1.msra.mxu0 %v48
    %230 = vmatprep.subr.mxu0 %v47
    %231 = vmatpush1.msra.mxu0 %v46
    %232 = vmatprep.subr.mxu0 %v45
    %233 = vmatpush1.msra.mxu0 %v44
    %234 = vmatprep.subr.mxu0 %v43
    %235 = vmatpush1.msra.mxu0 %v42
    %236 = vmatprep.subr.mxu0 %v105
    %237 = vmatpush2.msra.mxu0 %v104
    %238 = vmatprep.subr.mxu0 %v103
    %239 = vmatpush2.msra.mxu0 %v102
    %240 = vmatprep.subr.mxu0 %v101
    %241 = vmatpush2.msra.mxu0 %v100
    %242 = vmatprep.subr.mxu0 %v99
    %243 = vmatpush2.msra.mxu0 %v98
    %244 = vmatprep.subr.mxu0 %v97
    %245 = vmatpush2.msra.mxu0 %v96
    %246 = vmatprep.subr.mxu0 %v95
    %247 = vmatpush2.msra.mxu0 %v94
    %248 = vmatprep.subr.mxu0 %v93
    %249 = vmatpush2.msra.mxu0 %v92
    %250 = vmatprep.subr.mxu0 %v91
    %251 = vmatpush2.msra.mxu0 %v90
    %252 = vmatprep.subr.mxu0 %v89
    %253 = vmatpush2.msra.mxu0 %v88
    %254 = vmatprep.subr.mxu0 %v87
    %255 = vmatpush2.msra.mxu0 %v86
    %256 = vmatprep.subr.mxu0 %v85
    %257 = vmatpush2.msra.mxu0 %v84
    %258 = vmatprep.subr.mxu0 %v83
    %259 = vmatpush2.msra.mxu0 %v82
    %260 = vmatprep.subr.mxu0 %v81
    %261 = vmatpush2.msra.mxu0 %v80
    %262 = vmatprep.subr.mxu0 %v79
    %263 = vmatpush2.msra.mxu0 %v78
    %264 = vmatprep.subr.mxu0 %v77
    %265 = vmatpush2.msra.mxu0 %v76
    %266 = vmatprep.subr.mxu0 %v75
    %267 = vmatpush2.msra.mxu0 %v74
    %268 = vmatprep.mubr.f32.mxu0 %v198
    %269 = vmatmul.mubr.f32.gmra.mxu0 %v190
    %v270 = vpop.f32.mrf.mxu0
    %v271 = vadd.f32 %v175, %v270
    %v272 = vpop.f32.mrf.mxu0
    %v273 = vadd.f32 %v179, %v272
    %274 = vdwg.mxu0
    %275 = vmatprep.subr.mxu0 %v137
    %276 = vmatpush1.msra.mxu0 %v136
    %277 = vmatprep.subr.mxu0 %v135
    %278 = vmatpush1.msra.mxu0 %v134
    %279 = vmatprep.subr.mxu0 %v133
    %280 = vmatpush1.msra.mxu0 %v132
    %281 = vmatprep.subr.mxu0 %v131
    %282 = vmatpush1.msra.mxu0 %v130
    %283 = vmatprep.subr.mxu0 %v129
    %284 = vmatpush1.msra.mxu0 %v128
    %285 = vmatprep.subr.mxu0 %v127
    %286 = vmatpush1.msra.mxu0 %v126
    %287 = vmatprep.subr.mxu0 %v125
    %288 = vmatpush1.msra.mxu0 %v124
    %289 = vmatprep.subr.mxu0 %v123
    %290 = vmatpush1.msra.mxu0 %v122
    %291 = vmatprep.subr.mxu0 %v121
    %292 = vmatpush1.msra.mxu0 %v120
    %293 = vmatprep.subr.mxu0 %v119
    %294 = vmatpush1.msra.mxu0 %v118
    %295 = vmatprep.subr.mxu0 %v117
    %296 = vmatpush1.msra.mxu0 %v116
    %297 = vmatprep.subr.mxu0 %v115
    %298 = vmatpush1.msra.mxu0 %v114
    %299 = vmatprep.subr.mxu0 %v113
    %300 = vmatpush1.msra.mxu0 %v112
    %301 = vmatprep.subr.mxu0 %v111
    %302 = vmatpush1.msra.mxu0 %v110
    %303 = vmatprep.subr.mxu0 %v109
    %304 = vmatpush1.msra.mxu0 %v108
    %305 = vmatprep.subr.mxu0 %v107
    %306 = vmatpush1.msra.mxu0 %v106
    %307 = vmatprep.subr.mxu0 %v169
    %308 = vmatpush2.msra.mxu0 %v168
    %309 = vmatprep.subr.mxu0 %v167
    %310 = vmatpush2.msra.mxu0 %v166
    %311 = vmatprep.subr.mxu0 %v165
    %312 = vmatpush2.msra.mxu0 %v164
    %313 = vmatprep.subr.mxu0 %v163
    %314 = vmatpush2.msra.mxu0 %v162
    %315 = vmatprep.subr.mxu0 %v161
    %316 = vmatpush2.msra.mxu0 %v160
    %317 = vmatprep.subr.mxu0 %v159
    %318 = vmatpush2.msra.mxu0 %v158
    %319 = vmatprep.subr.mxu0 %v157
    %320 = vmatpush2.msra.mxu0 %v156
    %321 = vmatprep.subr.mxu0 %v155
    %322 = vmatpush2.msra.mxu0 %v154
    %323 = vmatprep.subr.mxu0 %v153
    %324 = vmatpush2.msra.mxu0 %v152
    %325 = vmatprep.subr.mxu0 %v151
    %326 = vmatpush2.msra.mxu0 %v150
    %327 = vmatprep.subr.mxu0 %v149
    %328 = vmatpush2.msra.mxu0 %v148
    %329 = vmatprep.subr.mxu0 %v147
    %330 = vmatpush2.msra.mxu0 %v146
    %331 = vmatprep.subr.mxu0 %v145
    %332 = vmatpush2.msra.mxu0 %v144
    %333 = vmatprep.subr.mxu0 %v143
    %334 = vmatpush2.msra.mxu0 %v142
    %335 = vmatprep.subr.mxu0 %v141
    %336 = vmatpush2.msra.mxu0 %v140
    %337 = vmatprep.subr.mxu0 %v139
    %338 = vmatpush2.msra.mxu0 %v138
    %339 = vmatprep.mubr.f32.mxu0 %v199
    %340 = vmatmul.mubr.f32.gmra.mxu0 %v197
    %v341 = vpop.f32.mrf.mxu0
    %v342 = vadd.f32 %v271, %v341
    %v343 = vpop.f32.mrf.mxu0
    %v344 = vadd.f32 %v273, %v343
    %345 = vdwg.mxu0
    %v346 = vmax.f32 %v342, 0.0
    %v347 = vmax.f32 %v344, 0.0
    %v348 = vld [vmem:[%s3] sm:$0xff]
    %v349 = vld [vmem:[%s3 + $0x8] sm:$0xff]
    %v350 = vld [vmem:[%s3 + $0x10] sm:$0xff]
    %v351 = vld [vmem:[%s3 + $0x18] sm:$0xff]
    %v352 = vld [vmem:[%s3 + $0x20] sm:$0xff]
    %v353 = vld [vmem:[%s3 + $0x28] sm:$0xff]
    %v354 = vld [vmem:[%s3 + $0x30] sm:$0xff]
    %v355 = vld [vmem:[%s3 + $0x38] sm:$0xff]
    %v356 = vld [vmem:[%s3 + $0x40] sm:$0xff]
    %v357 = vld [vmem:[%s3 + $0x48] sm:$0xff]
    %v358 = vld [vmem:[%s3 + $0x50] sm:$0xff]
    %v359 = vld [vmem:[%s3 + $0x58] sm:$0xff]
    %v360 = vld [vmem:[%s3 + $0x60] sm:$0xff]
    %v361 = vld [vmem:[%s3 + $0x68] sm:$0xff]
    %v362 = vld [vmem:[%s3 + $0x70] sm:$0xff]
    %v363 = vld [vmem:[%s3 + $0x78] sm:$0xff]
    %v364 = vld [vmem:[%s3 + $0x80] sm:$0xff]
    %v365 = vld [vmem:[%s3 + $0x88] sm:$0xff]
    %v366 = vld [vmem:[%s3 + $0x90] sm:$0xff]
    %v367 = vld [vmem:[%s3 + $0x98] sm:$0xff]
    %v368 = vld [vmem:[%s3 + $0xa0] sm:$0xff]
    %v369 = vld [vmem:[%s3 + $0xa8] sm:$0xff]
    %v370 = vld [vmem:[%s3 + $0xb0] sm:$0xff]
    %v371 = vld [vmem:[%s3 + $0xb8] sm:$0xff]
    %v372 = vld [vmem:[%s3 + $0xc0] sm:$0xff]
    %v373 = vld [vmem:[%s3 + $0xc8] sm:$0xff]
    %v374 = vld [vmem:[%s3 + $0xd0] sm:$0xff]
    %v375 = vld [vmem:[%s3 + $0xd8] sm:$0xff]
    %v376 = vld [vmem:[%s3 + $0xe0] sm:$0xff]
    %v377 = vld [vmem:[%s3 + $0xe8] sm:$0xff]
    %v378 = vld [vmem:[%s3 + $0xf0] sm:$0xff]
    %v379 = vld [vmem:[%s3 + $0xf8] sm:$0xff]
    %v380 = vld [vmem:[%s4] sm:$0x1]
    %v382 = vlaneseq
    %v383 = vshrl.u32 %v382, 7
    %v384 = vsub.s32 0, %v383
    %v385 = vrot.slane %v380, %v384
    %387 = vmatprep.subr.mxu0 0.0
    %388 = vmatpush1.msra.mxu0 %v363
    %389 = vmatprep.subr.mxu0 0.0
    %390 = vmatpush1.msra.mxu0 %v362
    %391 = vmatprep.subr.mxu0 0.0
    %392 = vmatpush1.msra.mxu0 %v361
    %393 = vmatprep.subr.mxu0 0.0
    %394 = vmatpush1.msra.mxu0 %v360
    %395 = vmatprep.subr.mxu0 0.0
    %396 = vmatpush1.msra.mxu0 %v359
    %397 = vmatprep.subr.mxu0 0.0
    %398 = vmatpush1.msra.mxu0 %v358
    %399 = vmatprep.subr.mxu0 0.0
    %400 = vmatpush1.msra.mxu0 %v357
    %401 = vmatprep.subr.mxu0 0.0
    %402 = vmatpush1.msra.mxu0 %v356
    %403 = vmatprep.subr.mxu0 0.0
    %404 = vmatpush1.msra.mxu0 %v355
    %405 = vmatprep.subr.mxu0 0.0
    %406 = vmatpush1.msra.mxu0 %v354
    %407 = vmatprep.subr.mxu0 0.0
    %408 = vmatpush1.msra.mxu0 %v353
    %409 = vmatprep.subr.mxu0 0.0
    %410 = vmatpush1.msra.mxu0 %v352
    %411 = vmatprep.subr.mxu0 0.0
    %412 = vmatpush1.msra.mxu0 %v351
    %413 = vmatprep.subr.mxu0 0.0
    %414 = vmatpush1.msra.mxu0 %v350
    %415 = vmatprep.subr.mxu0 0.0
    %416 = vmatpush1.msra.mxu0 %v349
    %417 = vmatprep.subr.mxu0 0.0
    %418 = vmatpush1.msra.mxu0 %v348
    %419 = vmatprep.subr.mxu0 0.0
    %420 = vmatpush2.msra.mxu0 %v379
    %421 = vmatprep.subr.mxu0 0.0
    %422 = vmatpush2.msra.mxu0 %v378
    %423 = vmatprep.subr.mxu0 0.0
    %424 = vmatpush2.msra.mxu0 %v377
    %425 = vmatprep.subr.mxu0 0.0
    %426 = vmatpush2.msra.mxu0 %v376
    %427 = vmatprep.subr.mxu0 0.0
    %428 = vmatpush2.msra.mxu0 %v375
    %429 = vmatprep.subr.mxu0 0.0
    %430 = vmatpush2.msra.mxu0 %v374
    %431 = vmatprep.subr.mxu0 0.0
    %432 = vmatpush2.msra.mxu0 %v373
    %433 = vmatprep.subr.mxu0 0.0
    %434 = vmatpush2.msra.mxu0 %v372
    %435 = vmatprep.subr.mxu0 0.0
    %436 = vmatpush2.msra.mxu0 %v371
    %437 = vmatprep.subr.mxu0 0.0
    %438 = vmatpush2.msra.mxu0 %v370
    %439 = vmatprep.subr.mxu0 0.0
    %440 = vmatpush2.msra.mxu0 %v369
    %441 = vmatprep.subr.mxu0 0.0
    %442 = vmatpush2.msra.mxu0 %v368
    %443 = vmatprep.subr.mxu0 0.0
    %444 = vmatpush2.msra.mxu0 %v367
    %445 = vmatprep.subr.mxu0 0.0
    %446 = vmatpush2.msra.mxu0 %v366
    %447 = vmatprep.subr.mxu0 0.0
    %448 = vmatpush2.msra.mxu0 %v365
    %449 = vmatprep.subr.mxu0 0.0
    %450 = vmatpush2.msra.mxu0 %v364
    %451 = vmatprep.mubr.f32.mxu0 %v347
    %452 = vmatmul.mubr.f32.gmra.mxu0 %v346
    %v453 = vpop.f32.mrf.mxu0
    %v454 = vadd.f32 %v385, %v453
    %v455 = vpop.f32.mrf.mxu0
    %456 = vdwg.mxu0
    %v457 = vmax.f32 %v454, 0.0
    %v458 = vld [vmem:[%s5] sm:$0xff]
    %v459 = vld [vmem:[%s5 + $0x8] sm:$0xff]
    %v460 = vld [vmem:[%s5 + $0x10] sm:$0xff]
    %v461 = vld [vmem:[%s5 + $0x18] sm:$0xff]
    %v462 = vld [vmem:[%s6] sm:$0x1]
    %v464 = vlaneseq
    %v465 = vshrl.u32 %v464, 7
    %v466 = vsub.s32 0, %v465
    %v467 = vrot.slane %v462, %v466
    %vm469 = vcmask 261120
    %v471 = vsel %vm469, %v457, 0
    %473 = vmatprep.subr.mxu0 0.0
    %474 = vmatpush1.msra.mxu0 0.0
    %475 = vmatprep.subr.mxu0 0.0
    %476 = vmatpush1.msra.mxu0 0.0
    %477 = vmatprep.subr.mxu0 0.0
    %478 = vmatpush1.msra.mxu0 0.0
    %479 = vmatprep.subr.mxu0 0.0
    %480 = vmatpush1.msra.mxu0 0.0
    %481 = vmatprep.subr.mxu0 0.0
    %482 = vmatpush1.msra.mxu0 0.0
    %483 = vmatprep.subr.mxu0 0.0
    %484 = vmatpush1.msra.mxu0 0.0
    %485 = vmatprep.subr.mxu0 0.0
    %486 = vmatpush1.msra.mxu0 0.0
    %487 = vmatprep.subr.mxu0 0.0
    %488 = vmatpush1.msra.mxu0 0.0
    %489 = vmatprep.subr.mxu0 0.0
    %490 = vmatpush1.msra.mxu0 0.0
    %491 = vmatprep.subr.mxu0 0.0
    %492 = vmatpush1.msra.mxu0 0.0
    %493 = vmatprep.subr.mxu0 0.0
    %494 = vmatpush1.msra.mxu0 0.0
    %495 = vmatprep.subr.mxu0 0.0
    %496 = vmatpush1.msra.mxu0 0.0
    %497 = vmatprep.subr.mxu0 0.0
    %498 = vmatpush1.msra.mxu0 %v461
    %499 = vmatprep.subr.mxu0 0.0
    %500 = vmatpush1.msra.mxu0 %v460
    %501 = vmatprep.subr.mxu0 0.0
    %502 = vmatpush1.msra.mxu0 %v459
    %503 = vmatprep.subr.mxu0 0.0
    %504 = vmatpush1.msra.mxu0 %v458
    %505 = vmatprep.subr.mxu0 0.0
    %506 = vmatpush2.msra.mxu0 0.0
    %507 = vmatprep.subr.mxu0 0.0
    %508 = vmatpush2.msra.mxu0 0.0
    %509 = vmatprep.subr.mxu0 0.0
    %510 = vmatpush2.msra.mxu0 0.0
    %511 = vmatprep.subr.mxu0 0.0
    %512 = vmatpush2.msra.mxu0 0.0
    %513 = vmatprep.subr.mxu0 0.0
    %514 = vmatpush2.msra.mxu0 0.0
    %515 = vmatprep.subr.mxu0 0.0
    %516 = vmatpush2.msra.mxu0 0.0
    %517 = vmatprep.subr.mxu0 0.0
    %518 = vmatpush2.msra.mxu0 0.0
    %519 = vmatprep.subr.mxu0 0.0
    %520 = vmatpush2.msra.mxu0 0.0
    %521 = vmatprep.subr.mxu0 0.0
    %522 = vmatpush2.msra.mxu0 0.0
    %523 = vmatprep.subr.mxu0 0.0
    %524 = vmatpush2.msra.mxu0 0.0
    %525 = vmatprep.subr.mxu0 0.0
    %526 = vmatpush2.msra.mxu0 0.0
    %527 = vmatprep.subr.mxu0 0.0
    %528 = vmatpush2.msra.mxu0 0.0
    %529 = vmatprep.subr.mxu0 0.0
    %530 = vmatpush2.msra.mxu0 0.0
    %531 = vmatprep.subr.mxu0 0.0
    %532 = vmatpush2.msra.mxu0 0.0
    %533 = vmatprep.subr.mxu0 0.0
    %534 = vmatpush2.msra.mxu0 0.0
    %535 = vmatprep.subr.mxu0 0.0
    %536 = vmatpush2.msra.mxu0 0.0
    %537 = vmatprep.mubr.f32.mxu0 0.0
    %538 = vmatmul.mubr.f32.gmra.mxu0 %v471
    %v539 = vpop.f32.mrf.mxu0
    %v540 = vadd.f32 %v467, %v539
    %v541 = vpop.f32.mrf.mxu0
    %542 = vdwg.mxu0
    %vm543 = vcmask 1041408
    %v544 = vsel %vm543, %v540, -inf
    %545 = vmax.xlane.f32.xlu0 %v544
    %v546 = vpop.xlane.xlu0 %545
    %v547 = vsub.f32 %v540, %v546
    %v548 = vmul.f32 %v547, 1.442695
    %v549 = vpow.pop %v548
    %v550 = vsel %vm543, %v549, 0.0
    %551 = vadd.xlane.f32.xlu0 %v550
    %v552 = vpop.xlane.xlu0 %551
    %v553 = vrcp.pop %v552
    %v554 = vmul.f32 %v549, %v553
    %555 = vst [vmem:[#allocation5] sm:$0x3] %v554
    // Predicated region
    $region34: #{localization_net.1} parent=1 // pred_check
      _
    $region35: #{localization_net.1} parent=1 // pred_check_branch
      %557 = sbr.rel (0) target = $region37
    $region36: #{localization_net.1} parent=1 // pred_region
      %s559 = ssub.s32 32, 32
      %560 = vsyncadd [#allocation4], %s559
      %s562 = sshll.u32 [#allocation5], 4
      %s563 = int_to_ptr.vmem [resolvable:$true] %s562
      %565 = dma.vmem_to_hbm [thread:$0]  %s563, 32, %s7, [#allocation4]
    $region37: #{localization_net.1} parent=1 // pred_fallthru
      _
    // Predicated region
    $region38: #{localization_net.1} parent=1 // pred_check
      _
    $region39: #{localization_net.1} parent=1 // pred_check_branch
      %567 = sbr.rel (0) target = $region41
    $region40: #{localization_net.1} parent=1 // pred_region
      %568 = dma.done [#allocation4], 32
    $region41: #{localization_net.1} parent=1 // pred_fallthru
      _
    %569 = vsyncpa [#allocation3], 1
    %570 = vsyncpa [#allocation4], 1

</llo_original>
